<compile_context>
chip_gen: v7x
topology: tpu7x:2x2x1
jax: 0.10.0
libtpu: 0.0.40
codegen_flags: <defaults>
</compile_context>

<pallas_src>
import jax
import jax.numpy as jnp
from jax import lax
from jax.experimental import pallas as pl
from jax.experimental.pallas import tpu as pltpu


def center_loss_kernel(xs_ref, ys_ref, center_ref, out_ref, sq_acc, cnt_acc):
    step = pl.program_id(0)

    @pl.when(step == 0)
    def _():
        sq_acc[...] = jnp.zeros_like(sq_acc)
        cnt_acc[...] = jnp.zeros_like(cnt_acc)

    xs = xs_ref[...].astype(jnp.float32)            # [T, F]
    ys = ys_ref[...]                                # [T, 1] int32
    center = center_ref[...].astype(jnp.float32)    # [C, F]

    t = xs.shape[0]
    c = center.shape[0]

    # F.normalize(x): x / max(||x||, eps) == x * rsqrt(max(||x||^2, eps^2)).
    # rsqrt rides the EUP slot; avoids an N*F-wide VPU divide.
    eps = 1e-12
    sumsq = jnp.sum(xs * xs, axis=1, keepdims=True)              # [T, 1]
    xs_n = xs * lax.rsqrt(jnp.maximum(sumsq, eps * eps))         # [T, F]

    # One-hot labels (rows with out-of-range labels, e.g. -1 padding, are zero).
    class_ids = lax.broadcasted_iota(jnp.int32, (t, c), 1)       # [T, C]
    onehot = (ys == class_ids).astype(jnp.float32)               # [T, C]

    # center.index_select(0, ys) as an MXU matmul (keep: MXU is otherwise idle).
    center_exp = jnp.dot(onehot, center,
                         preferred_element_type=jnp.float32)      # [T, F]

    diff = xs_n - center_exp
    sq = jnp.sum(diff * diff, axis=1, keepdims=True)             # [T, 1]

    # Per-class fold: accumulate sum_{i in class c} sq_i and the histogram.
    sq_acc[...] += jnp.sum(onehot * sq, axis=0, keepdims=True)   # [1, C]
    cnt_acc[...] += jnp.sum(onehot, axis=0, keepdims=True)       # [1, C]

    @pl.when(step == pl.num_programs(0) - 1)
    def _():
        cnt = cnt_acc[...]
        # C divides instead of N divides; guard empty classes (0 * inf -> NaN).
        recip = jnp.where(cnt > 0.0, 1.0 / cnt, 0.0)             # [1, C]
        # Output kept as a (1,1) VMEM block (proven lowering path for a
        # vector-reduced scalar; SMEM scalar store of a vreg value is fragile).
        out_ref[...] = jnp.sum(sq_acc[...] * recip, axis=1, keepdims=True)


def center_loss(xs, ys, center, *, tile_n=None):
    """xs: [N, F] float, ys: [N] integer labels, center: [C, F] float."""
    n, f = xs.shape
    c, f2 = center.shape
    assert f == f2, (f, f2)

    ys2 = ys.astype(jnp.int32).reshape(n, 1)

    if tile_n is None:
        # Largest convenient multiple-of-8 tile; 512 rows keeps the xs double
        # buffers (2 * tile_n * F * 4B) tiny relative to scoped VMEM on
        # v5e/v6e (128 MiB) and v7x (64 MiB) for typical feature sizes.
        tile_n = min(512, ((n + 7) // 8) * 8)
    tile_n = max(8, ((tile_n + 7) // 8) * 8)

    n_pad = ((n + tile_n - 1) // tile_n) * tile_n
    if n_pad != n:
        xs = jnp.pad(xs, ((0, n_pad - n), (0, 0)))
        # Label -1 -> all-zero one-hot row -> padded rows contribute nothing.
        ys2 = jnp.pad(ys2, ((0, n_pad - n), (0, 0)), constant_values=-1)

    grid = (n_pad // tile_n,)

    out = pl.pallas_call(
        center_loss_kernel,
        out_shape=jax.ShapeDtypeStruct((1, 1), jnp.float32),
        grid_spec=pltpu.PrefetchScalarGridSpec(
            num_scalar_prefetch=0,
            grid=grid,
            in_specs=[
                pl.BlockSpec((tile_n, f), lambda i: (i, 0)),   # xs tile
                pl.BlockSpec((tile_n, 1), lambda i: (i, 0)),   # ys tile
                pl.BlockSpec((c, f), lambda i: (0, 0)),        # center resident
            ],
            out_specs=pl.BlockSpec((1, 1), lambda i: (0, 0)),
            scratch_shapes=[
                pltpu.VMEM((1, c), jnp.float32),   # per-class squared-dist sums
                pltpu.VMEM((1, c), jnp.float32),   # per-class counts (histc)
            ],
        ),
        # Batch axis is a reduction into shared scratch + a single scalar
        # output block, so it must stay "arbitrary" (not megacore-sharded).
        compiler_params=pltpu.CompilerParams(
            dimension_semantics=("arbitrary",),
        ),
    )(xs, ys2, center)
    return out[0, 0]


def center_loss_ref(xs, ys, center):
    """Plain-JAX reference mirroring the PyTorch forward."""
    xs = xs.astype(jnp.float32)
    center = center.astype(jnp.float32)
    norm = jnp.sqrt(jnp.sum(xs * xs, axis=1, keepdims=True))
    xs_n = xs / jnp.maximum(norm, 1e-12)
    ys_i = ys.astype(jnp.int32)
    center_exp = center[ys_i]
    count = jnp.sum(
        (ys_i[:, None] == jnp.arange(center.shape[0])[None, :]).astype(jnp.float32),
        axis=0)
    count_exp = count[ys_i]
    return jnp.sum(jnp.sum((xs_n - center_exp) ** 2, axis=1) / count_exp)


if __name__ == "__main__":
    cls_num = 10
    feature_num = 32
    batch = 8

    key = jax.random.PRNGKey(0)
    k_xs, k_ys, k_center = jax.random.split(key, 3)

    xs = jax.random.normal(k_xs, (batch, feature_num), dtype=jnp.float32)
    ys = jax.random.randint(k_ys, (batch,), 0, cls_num, dtype=jnp.int32)
    # deterministic synthetic init of nn.Parameter(torch.randn(cls_num, feature_num))
    center = jax.random.normal(k_center, (cls_num, feature_num), dtype=jnp.float32)

    loss = center_loss(xs, ys, center)
    jax.block_until_ready(loss)
    ref = center_loss_ref(xs, ys, center)
    assert jnp.allclose(loss, ref, rtol=1e-5, atol=1e-5), (loss, ref)

    # Exercise the multi-step tiled/padded accumulation path as well.
    k_xs2, k_ys2 = jax.random.split(k_xs)
    xs2 = jax.random.normal(k_xs2, (40, feature_num), dtype=jnp.float32)
    ys2 = jax.random.randint(k_ys2, (40,), 0, cls_num, dtype=jnp.int32)
    loss2 = center_loss(xs2, ys2, center, tile_n=16)   # 40 -> pad 48, 3 grid steps
    jax.block_until_ready(loss2)
    ref2 = center_loss_ref(xs2, ys2, center)
    assert jnp.allclose(loss2, ref2, rtol=1e-5, atol=1e-5), (loss2, ref2)

    print("KERNEL_OK")
</pallas_src>

<mosaic_0001>
module attributes {stable_mosaic.version = 11 : i64} {
  func.func @center_loss_kernel(%arg0: i32, %arg1: memref<8x32xf32, #tpu.memory_space<vmem>>, %arg2: memref<8x1xi32, #tpu.memory_space<vmem>>, %arg3: memref<10x32xf32, #tpu.memory_space<vmem>>, %arg4: memref<1x1xf32, #tpu.memory_space<vmem>>, %arg5: memref<1x10xf32, #tpu.memory_space<vmem>>, %arg6: memref<1x10xf32, #tpu.memory_space<vmem>>) attributes {dimension_semantics = [#tpu.dimension_semantics<arbitrary>], iteration_bounds = array<i64: 1>, scalar_prefetch = 0 : i64, scratch_operands = 2 : i64, tpu.core_type = #tpu.core_type<tc>, window_params = [{transform_indices = @transform_0, window_bounds = array<i64: 8, 32>}, {transform_indices = @transform_1, window_bounds = array<i64: 8, 1>}, {pipeline_mode = #tpu.pipeline_mode<synchronous>, transform_indices = @transform_2, window_bounds = array<i64: 10, 32>}, {pipeline_mode = #tpu.pipeline_mode<synchronous>, transform_indices = @transform_3, window_bounds = array<i64: 1, 1>}]} {
    %c0_i32 = arith.constant 0 : i32
    %0 = arith.cmpi eq, %arg0, %c0_i32 : i32
    %1 = arith.extui %0 : i1 to i32
    %c0_i32_0 = arith.constant 0 : i32
    %2 = arith.cmpi ne, %1, %c0_i32_0 : i32
    scf.if %2 {
      %cst_21 = arith.constant 0.000000e+00 : f32
      %39 = vector.broadcast %cst_21 : f32 to vector<1x10xf32>
      %c0_22 = arith.constant 0 : index
      %c0_23 = arith.constant 0 : index
      %40 = vector.load %arg5[%c0_22, %c0_23] : memref<1x10xf32, #tpu.memory_space<vmem>>, vector<1x10xf32>
      tpu.vector_store %arg5[%c0_22, %c0_23], %39 {strides = array<i32>} : memref<1x10xf32, #tpu.memory_space<vmem>>, vector<1x10xf32>,
      %cst_24 = arith.constant 0.000000e+00 : f32
      %41 = vector.broadcast %cst_24 : f32 to vector<1x10xf32>
      %c0_25 = arith.constant 0 : index
      %c0_26 = arith.constant 0 : index
      %42 = vector.load %arg6[%c0_25, %c0_26] : memref<1x10xf32, #tpu.memory_space<vmem>>, vector<1x10xf32>
      tpu.vector_store %arg6[%c0_25, %c0_26], %41 {strides = array<i32>} : memref<1x10xf32, #tpu.memory_space<vmem>>, vector<1x10xf32>,
    } else {
    }
    %c0 = arith.constant 0 : index
    %c0_1 = arith.constant 0 : index
    %3 = vector.load %arg1[%c0, %c0_1] : memref<8x32xf32, #tpu.memory_space<vmem>>, vector<8x32xf32>
    %c0_2 = arith.constant 0 : index
    %c0_3 = arith.constant 0 : index
    %4 = vector.load %arg2[%c0_2, %c0_3] : memref<8x1xi32, #tpu.memory_space<vmem>>, vector<8x1xi32>
    %c0_4 = arith.constant 0 : index
    %c0_5 = arith.constant 0 : index
    %5 = vector.load %arg3[%c0_4, %c0_5] : memref<10x32xf32, #tpu.memory_space<vmem>>, vector<10x32xf32>
    %6 = arith.mulf %3, %3 : vector<8x32xf32>
    %cst = arith.constant dense<0.000000e+00> : vector<8xf32>
    %7 = vector.multi_reduction <add>, %6, %cst [1] : vector<8x32xf32> to vector<8xf32>
    %8 = vector.shape_cast %7 : vector<8xf32> to vector<8x1xf32>
    %cst_6 = arith.constant 1.000000e-24 : f32
    %9 = vector.broadcast %cst_6 : f32 to vector<8x1xf32>
    %10 = arith.maximumf %8, %9 : vector<8x1xf32>
    %11 = math.rsqrt %10 : vector<8x1xf32>
    %12 = vector.broadcast %11 : vector<8x1xf32> to vector<8x32xf32>
    %13 = arith.mulf %3, %12 : vector<8x32xf32>
    %14 = tpu.iota {dimensions = array<i32: 1>} : vector<8x10xi32>
    %15 = vector.broadcast %4 : vector<8x1xi32> to vector<8x10xi32>
    %16 = arith.cmpi eq, %15, %14 : vector<8x10xi32>
    %17 = arith.extui %16 : vector<8x10xi1> to vector<8x10xi32>
    %18 = arith.sitofp %17 : vector<8x10xi32> to vector<8x10xf32>
    %cst_7 = arith.constant dense<0.000000e+00> : vector<8x32xf32>
    %19 = tpu.matmul %18, %5, %cst_7 {dimension_numbers = #tpu.dot_dimension_numbers<[1], [0], [0], [1], [0, 0, 1, 1], [], []>} : vector<8x10xf32>, vector<10x32xf32>, vector<8x32xf32> -> vector<8x32xf32>
    %20 = arith.subf %13, %19 : vector<8x32xf32>
    %21 = arith.mulf %20, %20 : vector<8x32xf32>
    %cst_8 = arith.constant dense<0.000000e+00> : vector<8xf32>
    %22 = vector.multi_reduction <add>, %21, %cst_8 [1] : vector<8x32xf32> to vector<8xf32>
    %23 = vector.shape_cast %22 : vector<8xf32> to vector<8x1xf32>
    %c0_9 = arith.constant 0 : index
    %c0_10 = arith.constant 0 : index
    %24 = vector.load %arg5[%c0_9, %c0_10] : memref<1x10xf32, #tpu.memory_space<vmem>>, vector<1x10xf32>
    %25 = vector.broadcast %23 : vector<8x1xf32> to vector<8x10xf32>
    %26 = arith.mulf %18, %25 : vector<8x10xf32>
    %cst_11 = arith.constant dense<0.000000e+00> : vector<10xf32>
    %27 = vector.multi_reduction <add>, %26, %cst_11 [0] : vector<8x10xf32> to vector<10xf32>
    %28 = vector.shape_cast %27 : vector<10xf32> to vector<1x10xf32>
    %29 = arith.addf %24, %28 : vector<1x10xf32>
    %c0_12 = arith.constant 0 : index
    %c0_13 = arith.constant 0 : index
    %30 = vector.load %arg5[%c0_12, %c0_13] : memref<1x10xf32, #tpu.memory_space<vmem>>, vector<1x10xf32>
    tpu.vector_store %arg5[%c0_12, %c0_13], %29 {strides = array<i32>} : memref<1x10xf32, #tpu.memory_space<vmem>>, vector<1x10xf32>,
    %c0_14 = arith.constant 0 : index
    %c0_15 = arith.constant 0 : index
    %31 = vector.load %arg6[%c0_14, %c0_15] : memref<1x10xf32, #tpu.memory_space<vmem>>, vector<1x10xf32>
    %cst_16 = arith.constant dense<0.000000e+00> : vector<10xf32>
    %32 = vector.multi_reduction <add>, %18, %cst_16 [0] : vector<8x10xf32> to vector<10xf32>
    %33 = vector.shape_cast %32 : vector<10xf32> to vector<1x10xf32>
    %34 = arith.addf %31, %33 : vector<1x10xf32>
    %c0_17 = arith.constant 0 : index
    %c0_18 = arith.constant 0 : index
    %35 = vector.load %arg6[%c0_17, %c0_18] : memref<1x10xf32, #tpu.memory_space<vmem>>, vector<1x10xf32>
    tpu.vector_store %arg6[%c0_17, %c0_18], %34 {strides = array<i32>} : memref<1x10xf32, #tpu.memory_space<vmem>>, vector<1x10xf32>,
    %c0_i32_19 = arith.constant 0 : i32
    %36 = arith.cmpi eq, %arg0, %c0_i32_19 : i32
    %37 = arith.extui %36 : i1 to i32
    %c0_i32_20 = arith.constant 0 : i32
    %38 = arith.cmpi ne, %37, %c0_i32_20 : i32
    scf.if %38 {
      %c0_21 = arith.constant 0 : index
      %c0_22 = arith.constant 0 : index
      %39 = vector.load %arg6[%c0_21, %c0_22] : memref<1x10xf32, #tpu.memory_space<vmem>>, vector<1x10xf32>
      %cst_23 = arith.constant 0.000000e+00 : f32
      %40 = vector.broadcast %cst_23 : f32 to vector<1x10xf32>
      %41 = arith.cmpf ogt, %39, %40 : vector<1x10xf32>
      %cst_24 = arith.constant 1.000000e+00 : f32
      %42 = vector.broadcast %cst_24 : f32 to vector<1x10xf32>
      %43 = arith.divf %42, %39 : vector<1x10xf32>
      %cst_25 = arith.constant 0.000000e+00 : f32
      %44 = vector.broadcast %cst_25 : f32 to vector<1x10xf32>
      %45 = arith.select %41, %43, %44 : vector<1x10xi1>, vector<1x10xf32>
      %c0_26 = arith.constant 0 : index
      %c0_27 = arith.constant 0 : index
      %46 = vector.load %arg5[%c0_26, %c0_27] : memref<1x10xf32, #tpu.memory_space<vmem>>, vector<1x10xf32>
      %47 = arith.mulf %46, %45 : vector<1x10xf32>
      %cst_28 = arith.constant dense<0.000000e+00> : vector<1xf32>
      %48 = vector.multi_reduction <add>, %47, %cst_28 [1] : vector<1x10xf32> to vector<1xf32>
      %49 = vector.shape_cast %48 : vector<1xf32> to vector<1x1xf32>
      %c0_29 = arith.constant 0 : index
      %c0_30 = arith.constant 0 : index
      %50 = vector.load %arg4[%c0_29, %c0_30] : memref<1x1xf32, #tpu.memory_space<vmem>>, vector<1x1xf32>
      tpu.vector_store %arg4[%c0_29, %c0_30], %49 {strides = array<i32>} : memref<1x1xf32, #tpu.memory_space<vmem>>, vector<1x1xf32>,
    } else {
    }
    return
  }
  func.func @transform_0(%arg0: i32) -> (i32, i32) {
    %c0_i32 = arith.constant 0 : i32
    %c0_i32_0 = arith.constant 0 : i32
    return %arg0, %c0_i32 : i32, i32
  }
  func.func @transform_1(%arg0: i32) -> (i32, i32) {
    %c0_i32 = arith.constant 0 : i32
    %c0_i32_0 = arith.constant 0 : i32
    return %arg0, %c0_i32 : i32, i32
  }
  func.func @transform_2(%arg0: i32) -> (i32, i32) {
    %c0_i32 = arith.constant 0 : i32
    %c0_i32_0 = arith.constant 0 : i32
    %c0_i32_1 = arith.constant 0 : i32
    return %c0_i32, %c0_i32_0 : i32, i32
  }
  func.func @transform_3(%arg0: i32) -> (i32, i32) {
    %c0_i32 = arith.constant 0 : i32
    %c0_i32_0 = arith.constant 0 : i32
    %c0_i32_1 = arith.constant 0 : i32
    return %c0_i32, %c0_i32_0 : i32, i32
  }
}

</mosaic_0001>

<llo_original>
// kernel: tpu_custom_call.1
$region0: #{tpu_custom_call.1}
  #allocation0 [shape = 'u32[]', space=smem, size = 0x4, offset = 0x4, fixed_abs, tag = 'smem constant byte address 0x4 - core index']
  #allocation1 [shape = 'u32[144,128]{1,0:T(1,128)}', space=vmem, size = 0x12000, scoped, tag = 'internal scratch']
  #allocation2 [shape = 'f32[1,10]{1,0:T(1,128)}', space=vmem, size = 0x200, scoped, tag = 'scratch operand']
  #allocation3 [shape = 'f32[1,10]{1,0:T(1,128)}', space=vmem, size = 0x200, scoped, tag = 'scratch operand']
  %s0 = inlined_call_operand.hbm [shape: f32[8,32], index: 0, kind: input, shape index: {}]
  %s1 = inlined_call_operand.vmem [shape: s32[8,1], index: 1, kind: input, shape index: {}]
  %s2 = inlined_call_operand.vmem [shape: f32[10,32], index: 2, kind: input, shape index: {}]
  %s3 = inlined_call_operand.hbm [shape: f32[1,1], index: 3, kind: output, shape index: {}]
  %s4 = sld [smem:[#allocation0]]
  $region34: #{tpu_custom_call.1} parent=0
    _
  %s6 = ssub.s32 1, %s4
  %s7 = scalar_select 0, %s6, %s4
  $region1: #{tpu_custom_call.1} parent=0
    #allocation4 [shape = 'u8[4096]{0}', space=vmem, size = 0x1000, scoped, tag = 'input window, operand 0, single buffered']
    #allocation5 [shape = 's32[1]{0}', space=sflag, size = 0x4, scoped, tag = 'scoped memory for tpu_custom_call.1']
    #allocation6 [shape = 's32[1]{0}', space=sflag, size = 0x4, scoped, tag = 'scoped memory for tpu_custom_call.1']
    #allocation7 [shape = 'u8[512]{0}', space=vmem, size = 0x400, scoped, tag = 'output window, operand 0, single buffered']
    %8 = vsyncpa [#allocation5], 0
    %9 = vsyncpa [#allocation6], 0
    // Predicated region
    $region2: #{tpu_custom_call.1} parent=1 // pred_check
      _
    $region3: #{tpu_custom_call.1} parent=1 // pred_check_branch
      %11 = sbr.rel (0) target = $region5
    $region4: #{tpu_custom_call.1} parent=1 // pred_region
      %s13 = ssub.s32 128, 128
      %14 = vsyncadd [#allocation5], %s13
      %s16 = sshll.u32 [#allocation4], 4
      %s17 = int_to_ptr.vmem [resolvable:$true] %s16
      %19 = dma.hbm_to_vmem [thread:$0]  %s0, 128, %s17, [#allocation5]
    $region5: #{tpu_custom_call.1} parent=1 // pred_fallthru
      _
    // Predicated region
    $region6: #{tpu_custom_call.1} parent=1 // pred_check
      _
    $region7: #{tpu_custom_call.1} parent=1 // pred_check_branch
      %21 = sbr.rel (0) target = $region9
    $region8: #{tpu_custom_call.1} parent=1 // pred_region
      _
    $region9: #{tpu_custom_call.1} parent=1 // pred_fallthru
      _
    // Predicated region
    $region10: #{tpu_custom_call.1} parent=1 // pred_check
      _
    $region11: #{tpu_custom_call.1} parent=1 // pred_check_branch
      %23 = sbr.rel (0) target = $region13
    $region12: #{tpu_custom_call.1} parent=1 // pred_region
      _
    $region13: #{tpu_custom_call.1} parent=1 // pred_fallthru
      _
    // Predicated region
    $region14: #{tpu_custom_call.1} parent=1 // pred_check
      _
    $region15: #{tpu_custom_call.1} parent=1 // pred_check_branch
      %25 = sbr.rel (0) target = $region17
    $region16: #{tpu_custom_call.1} parent=1 // pred_region
      %26 = dma.done [#allocation5], 128
    $region17: #{tpu_custom_call.1} parent=1 // pred_fallthru
      _
    %p27 = scmp.eq.s32.totalorder 0, 0
    // Predicated region
    $region18: #{tpu_custom_call.1} parent=1 // pred_check
      %p28 = pneg %p27
    $region19: #{tpu_custom_call.1} parent=1 // pred_check_branch
      %30 = sbr.rel (%p28) target = $region21
    $region20: #{tpu_custom_call.1} parent=1 // pred_region
      %vm31 = vcmask 73728
      %32 = vst.msk [vmem:[#allocation2] sm:$0x1] %vm31, 0.0
      %33 = vst.msk [vmem:[#allocation3] sm:$0x1] %vm31, 0.0
    $region21: #{tpu_custom_call.1} parent=1 // pred_fallthru
      _
    %v34 = vld [vmem:[#allocation4] sm:$0xff]
    %v35 = vld [vmem:[%s1] sm:$0xff]
    %v36 = vld [vmem:[%s2] sm:$0xff]
    %v37 = vld [vmem:[%s2 + $0x8] sm:$0x3]
    %v38 = vmul.f32 %v34, %v34
    %vm39 = vcmask 261120
    %v40 = vsel %vm39, %v38, 0.0
    %41 = vadd.xlane.f32.xlu0 %v40
    %v42 = vpop.xlane.xlu0 %41
    %v43 = vmax.f32 %v42, 1e-24
    %v44 = vrsqrt.pop %v43
    %v45 = vmul.f32 %v34, %v44
    %v46 = vlaneseq
    %v47 = vand.u32 %v46, 127
    %48 = vset.pattern.permute.xlu0 0
    %49 = vperm.xlu0 %48, %v35
    %v50 = vpop.permute.xlu0 %49
    %vm51 = vcmp.eq.s32.totalorder %v50, %v47
    %v52 = vsel %vm51, 1, 0
    %v53 = vcvt.s32.f32 %v52
    %vm54 = vcmask 80896
    %v56 = vsel %vm54, %v53, 0
    %vm58 = vcmask 1041408
    %v60 = vsel %vm58, %v37, 0
    %62 = vmatprep.subr.mxu0 0.0
    %63 = vmatpush1.msra.mxu0 %v36
    %64 = vmatprep.subr.mxu0 0.0
    %65 = vmatpush1.msra.mxu0 %v60
    %66 = vmatprep.subr.mxu0 0.0
    %67 = vmatpush1.msra.mxu0 0.0
    %68 = vmatprep.subr.mxu0 0.0
    %69 = vmatpush1.msra.mxu0 0.0
    %70 = vmatprep.subr.mxu0 0.0
    %71 = vmatpush1.msra.mxu0 0.0
    %72 = vmatprep.subr.mxu0 0.0
    %73 = vmatpush1.msra.mxu0 0.0
    %74 = vmatprep.subr.mxu0 0.0
    %75 = vmatpush1.msra.mxu0 0.0
    %76 = vmatprep.subr.mxu0 0.0
    %77 = vmatpush1.msra.mxu0 0.0
    %78 = vmatprep.subr.mxu0 0.0
    %79 = vmatpush1.msra.mxu0 0.0
    %80 = vmatprep.subr.mxu0 0.0
    %81 = vmatpush1.msra.mxu0 0.0
    %82 = vmatprep.subr.mxu0 0.0
    %83 = vmatpush1.msra.mxu0 0.0
    %84 = vmatprep.subr.mxu0 0.0
    %85 = vmatpush1.msra.mxu0 0.0
    %86 = vmatprep.subr.mxu0 0.0
    %87 = vmatpush1.msra.mxu0 0.0
    %88 = vmatprep.subr.mxu0 0.0
    %89 = vmatpush1.msra.mxu0 0.0
    %90 = vmatprep.subr.mxu0 0.0
    %91 = vmatpush1.msra.mxu0 0.0
    %92 = vmatprep.subr.mxu0 0.0
    %93 = vmatpush1.msra.mxu0 0.0
    %94 = vmatprep.subr.mxu0 0.0
    %95 = vmatpush1.msra.mxu0 0.0
    %96 = vmatprep.subr.mxu0 0.0
    %97 = vmatpush1.msra.mxu0 0.0
    %98 = vmatprep.subr.mxu0 0.0
    %99 = vmatpush1.msra.mxu0 0.0
    %100 = vmatprep.subr.mxu0 0.0
    %101 = vmatpush1.msra.mxu0 0.0
    %102 = vmatprep.subr.mxu0 0.0
    %103 = vmatpush1.msra.mxu0 0.0
    %104 = vmatprep.subr.mxu0 0.0
    %105 = vmatpush1.msra.mxu0 0.0
    %106 = vmatprep.subr.mxu0 0.0
    %107 = vmatpush1.msra.mxu0 0.0
    %108 = vmatprep.subr.mxu0 0.0
    %109 = vmatpush1.msra.mxu0 0.0
    %110 = vmatprep.subr.mxu0 0.0
    %111 = vmatpush1.msra.mxu0 0.0
    %112 = vmatprep.subr.mxu0 0.0
    %113 = vmatpush1.msra.mxu0 0.0
    %114 = vmatprep.subr.mxu0 0.0
    %115 = vmatpush1.msra.mxu0 0.0
    %116 = vmatprep.subr.mxu0 0.0
    %117 = vmatpush1.msra.mxu0 0.0
    %118 = vmatprep.subr.mxu0 0.0
    %119 = vmatpush1.msra.mxu0 0.0
    %120 = vmatprep.subr.mxu0 0.0
    %121 = vmatpush1.msra.mxu0 0.0
    %122 = vmatprep.subr.mxu0 0.0
    %123 = vmatpush1.msra.mxu0 0.0
    %124 = vmatprep.subr.mxu0 0.0
    %125 = vmatpush1.msra.mxu0 0.0
    %126 = vmatprep.mubr.f32.mxu0 0.0
    %127 = vmatmul.mubr.f32.gmra.mrb[0].mxu0 %v56
    %v128 = vpop.f32.mrb[0].mxu0
    %v129 = vadd.f32 0.0, %v128
    %v130 = vpop.f32.mrb[0].mxu0
    %131 = vdwg.mxu0
    %v132 = vsub.f32 %v45, %v129
    %v133 = vmul.f32 %v132, %v132
    %v134 = vsel %vm39, %v133, 0.0
    %135 = vadd.xlane.f32.xlu0 %v134
    %v136 = vpop.xlane.xlu0 %135
    %v137 = vld [vmem:[#allocation2] sm:$0x1]
    %v138 = vmul.f32 %v53, %v136
    %v139 = vsel %vm54, %v138, 0.0
    %v140 = vrot.slane %v139, 4
    %v141 = vadd.f32 %v139, %v140
    %v142 = vrot.slane %v141, 2
    %v143 = vadd.f32 %v141, %v142
    %v144 = vrot.slane %v143, 1
    %v145 = vadd.f32 %v143, %v144
    %v146 = vadd.f32 %v137, %v145
    %vm147 = vcmask 73728
    %148 = vst.msk [vmem:[#allocation2] sm:$0x1] %vm147, %v146
    %v149 = vld [vmem:[#allocation3] sm:$0x1]
    %v150 = vsel %vm54, %v53, 0.0
    %v151 = vrot.slane %v150, 4
    %v152 = vadd.f32 %v150, %v151
    %v153 = vrot.slane %v152, 2
    %v154 = vadd.f32 %v152, %v153
    %v155 = vrot.slane %v154, 1
    %v156 = vadd.f32 %v154, %v155
    %v157 = vadd.f32 %v149, %v156
    %158 = vst.msk [vmem:[#allocation3] sm:$0x1] %vm147, %v157
    // Predicated region
    $region22: #{tpu_custom_call.1} parent=1 // pred_check
      %p159 = pneg %p27
    $region23: #{tpu_custom_call.1} parent=1 // pred_check_branch
      %161 = sbr.rel (%p159) target = $region25
    $region24: #{tpu_custom_call.1} parent=1 // pred_region
      %v162 = vld [vmem:[#allocation3] sm:$0x1]
      %vm163 = vcmp.gt.f32.partialorder %v162, 0.0
      %v164 = vrcp.pop %v162
      %v165 = vmul.f32 1.0, %v164
      %v166 = vsel %vm163, %v165, 0.0
      %v167 = vld [vmem:[#allocation2] sm:$0x1]
      %v168 = vmul.f32 %v167, %v166
      %v169 = vsel %vm147, %v168, 0.0
      %170 = vadd.xlane.f32.xlu0 %v169
      %v171 = vpop.xlane.xlu0 %170
      %vm172 = vcmask 0
      %173 = vst.msk [vmem:[#allocation7] sm:$0x1] %vm172, %v171
    $region25: #{tpu_custom_call.1} parent=1 // pred_fallthru
      _
    // Predicated region
    $region26: #{tpu_custom_call.1} parent=1 // pred_check
      _
    $region27: #{tpu_custom_call.1} parent=1 // pred_check_branch
      %175 = sbr.rel (0) target = $region29
    $region28: #{tpu_custom_call.1} parent=1 // pred_region
      %s177 = ssub.s32 16, 16
      %178 = vsyncadd [#allocation6], %s177
      %s180 = sshll.u32 [#allocation7], 4
      %s181 = int_to_ptr.vmem [resolvable:$true] %s180
      %183 = dma.vmem_to_hbm [thread:$0]  %s181, 16, %s3, [#allocation6]
    $region29: #{tpu_custom_call.1} parent=1 // pred_fallthru
      _
    // Predicated region
    $region30: #{tpu_custom_call.1} parent=1 // pred_check
      _
    $region31: #{tpu_custom_call.1} parent=1 // pred_check_branch
      %185 = sbr.rel (0) target = $region33
    $region32: #{tpu_custom_call.1} parent=1 // pred_region
      %186 = dma.done [#allocation6], 16
    $region33: #{tpu_custom_call.1} parent=1 // pred_fallthru
      _
    %187 = vsyncpa [#allocation5], 1
    %188 = vsyncpa [#allocation6], 1

</llo_original>
